<compile_context>
chip_gen: v6e
topology: v6e:2x2x1
jax: 0.10.0
libtpu: 0.0.40
codegen_flags: <defaults>
</compile_context>

<pallas_src>
import functools

import jax
import jax.numpy as jnp
from jax.experimental import pallas as pl
from jax.experimental.pallas import tpu as pltpu

_LANE = 128


# ----------------------------- helpers ---------------------------------------

def _round_up(x, n):
    return ((x + n - 1) // n) * n


def _cdiv(a, b):
    return (a + b - 1) // b


def _gelu(h, exact):
    if exact:
        # Exact erf-based GELU (matches torch.nn.GELU() default).
        return 0.5 * h * (1.0 + jax.lax.erf(h * 0.7071067811865476))
    # tanh approximation: exp/tanh run on the EUP (separate VLIW slot), which
    # shrinks the VPU bubble between the two MXU matmuls (slight numeric
    # deviation from torch's exact GELU).
    return jax.nn.gelu(h, approximate=True)


def _vmem_capacity_bytes():
    try:
        return int(pltpu.get_tpu_info().vmem_capacity_bytes)
    except Exception:
        return 128 * 1024 * 1024  # v5e/v6e default


def _chip_tile_targets(vmem_cap):
    """Per-generation default (tile_m, tile_k) targets (roofline-driven)."""
    kind = ""
    try:
        kind = jax.devices()[0].device_kind.lower()
    except Exception:
        pass
    if "v7" in kind or vmem_cap <= 80 * 1024 * 1024:
        # v7x: only ~310 FLOPs/weight-byte needed, but 64 MiB VMEM.
        return 512, 512
    if "v5 lite" in kind or "v5e" in kind or "v5lite" in kind:
        # v5e: ~240 FLOPs/weight-byte needed, weak VPU -> moderate tile_m.
        return 384, 512
    # v6e (128 MiB VMEM): ~720 FLOPs/weight-byte needed -> big tile_m.
    return 1024, 512


def _pick_tk(k128, target):
    """Largest multiple-of-128 divisor of k128 that is <= target."""
    q = k128 // _LANE
    best = _LANE
    for d in range(1, q + 1):
        if q % d == 0 and _LANE * d <= target:
            best = _LANE * d
    return best


# ----------------------------- kernels ----------------------------------------

def _mlp_kernel_resident(x_ref, w1_ref, b1_ref, w2_ref, b2_ref, o_ref, *, exact_gelu):
    # x_ref: (tm, d_in); w1_ref: (d_in, k); b1_ref: (1, k);
    # w2_ref: (k, d_in); b2_ref: (1, d_in); o_ref: (tm, d_in).
    h = jnp.dot(x_ref[...], w1_ref[...], preferred_element_type=jnp.float32)
    h = h + b1_ref[...]
    g = _gelu(h, exact_gelu)
    y = jnp.dot(g.astype(w2_ref.dtype), w2_ref[...],
                preferred_element_type=jnp.float32)
    o_ref[...] = (y + b2_ref[...]).astype(o_ref.dtype)


def _mlp_kernel_tiled(x_ref, w1_ref, b1_ref, w2_ref, b2_ref, o_ref, acc_ref, *, exact_gelu):
    # Grid = (M tiles "parallel", d_mlp tiles "arbitrary"); acc_ref is an f32
    # VMEM accumulator resident across the k axis.
    k = pl.program_id(1)

    @pl.when(k == 0)
    def _init():
        acc_ref[...] = jnp.zeros_like(acc_ref)

    h = jnp.dot(x_ref[...], w1_ref[...], preferred_element_type=jnp.float32)
    h = h + b1_ref[...]
    g = _gelu(h, exact_gelu)
    acc_ref[...] += jnp.dot(g.astype(w2_ref.dtype), w2_ref[...],
                            preferred_element_type=jnp.float32)

    @pl.when(k == pl.num_programs(1) - 1)
    def _store():
        o_ref[...] = (acc_ref[...] + b2_ref[...]).astype(o_ref.dtype)


# ----------------------------- wrapper ----------------------------------------

def prepare_mlp_params(w1, b1, w2, b2, *, compute_dtype=jnp.bfloat16):
    """One-time weight prep (do this OUTSIDE the per-step call): cast matmul
    operands to compute_dtype, biases to f32, zero-pad d_mlp to a lane multiple.
    Avoids per-call full-weight HBM cast/pad passes."""
    d_in, d_mlp = w1.shape
    k128 = _round_up(d_mlp, _LANE)
    w1c = w1.astype(compute_dtype)
    w2c = w2.astype(compute_dtype)
    b1f = b1.astype(jnp.float32)
    b2f = b2.astype(jnp.float32)
    if k128 != d_mlp:
        # Zero cols/rows + zero bias -> gelu(0)=0 -> zero contribution.
        w1c = jnp.pad(w1c, ((0, 0), (0, k128 - d_mlp)))
        b1f = jnp.pad(b1f, ((0, k128 - d_mlp),))
        w2c = jnp.pad(w2c, ((0, k128 - d_mlp), (0, 0)))
    return w1c, b1f.reshape(1, k128), w2c, b2f.reshape(1, d_in)


def mlp_block(x, w1, b1, w2, b2, *, tile_m=None, tile_k=None,
              compute_dtype=jnp.bfloat16, exact_gelu=True,
              max_resident_weight_bytes=None):
    """x: [..., d_in]; w1: [d_in, d_mlp]; b1: [d_mlp] (or [1, d_mlp]);
    w2: [d_mlp, d_in]; b2: [d_in] (or [1, d_in])."""
    orig_shape = x.shape
    out_dtype = x.dtype
    d_in = orig_shape[-1]

    cbytes = jnp.dtype(compute_dtype).itemsize
    obytes = jnp.dtype(out_dtype).itemsize
    sub = 32 // cbytes  # sublane alignment: 8 (f32), 16 (bf16), 32 (8-bit)

    # Normalize params; this is a no-op when prepare_mlp_params() was used.
    if w1.dtype != compute_dtype:
        w1 = w1.astype(compute_dtype)   # NOTE: extra HBM pass; prefer prepare_mlp_params
    if w2.dtype != compute_dtype:
        w2 = w2.astype(compute_dtype)   # NOTE: extra HBM pass; prefer prepare_mlp_params
    b1 = b1.astype(jnp.float32).reshape(1, -1)
    b2 = b2.astype(jnp.float32).reshape(1, -1)

    d_mlp = w1.shape[1]
    k128 = _round_up(d_mlp, _LANE)
    if k128 != d_mlp:                   # NOTE: per-call pad; prefer prepare_mlp_params
        w1 = jnp.pad(w1, ((0, 0), (0, k128 - d_mlp)))
        b1 = jnp.pad(b1, ((0, 0), (0, k128 - d_mlp)))
        w2 = jnp.pad(w2, ((0, k128 - d_mlp), (0, 0)))

    x2d = x.reshape(-1, d_in).astype(compute_dtype)
    m = x2d.shape[0]
    m_round = _round_up(m, sub)

    vmem_cap = _vmem_capacity_bytes()
    headroom = 8 * 1024 * 1024
    budget = max(vmem_cap - headroom, 16 * 1024 * 1024)   # never exceed physical VMEM
    tm_target, tk_target = _chip_tile_targets(vmem_cap)
    if tile_m is not None:
        tm_target = tile_m
    if tile_k is not None:
        tk_target = tile_k

    weight_bytes = (w1.size + w2.size) * cbytes + (b1.size + b2.size) * 4
    resident_cap = (int(0.4 * budget) if max_resident_weight_bytes is None
                    else int(max_resident_weight_bytes))

    if weight_bytes <= resident_cap:
        # -------- weights-resident path: weights DMA'd once total -------------
        per_row = (2 * d_in * cbytes        # x tiles (double-buffered)
                   + 2 * d_in * obytes      # out tiles (double-buffered)
                   + d_in * 4               # f32 fc2 result before cast
                   + k128 * (4 + cbytes))   # h (f32) + g (compute dtype)
        # Conservatively assume the pipeline still holds 2 buffers for the
        # constant-index weight inputs.
        avail = max(budget - 2 * weight_bytes, 4 * 1024 * 1024)
        tm = min(tm_target, max(sub, (avail * 9 // 10) // per_row), m_round)
        tm = max(sub, (tm // sub) * sub)
        # >= 2 M-tiles when possible so both v7x TensorCores get work (free
        # here since the weights are not re-streamed per M-tile).
        if m_round >= 2 * sub and m_round <= tm:
            tm = _round_up(_cdiv(m_round, 2), sub)
        m_pad = _round_up(m, tm)
        n_m = m_pad // tm
        if m_pad != m:
            x2d = jnp.pad(x2d, ((0, m_pad - m), (0, 0)))

        vmem_est = 2 * weight_bytes + tm * per_row
        vmem_limit = int(min(budget, max(32 * 1024 * 1024, int(1.25 * vmem_est))))
        cost = pl.CostEstimate(
            flops=4 * m_pad * d_in * k128,
            transcendentals=m_pad * k128,
            bytes_accessed=int(x2d.size * cbytes + weight_bytes
                               + m_pad * d_in * obytes),
        )
        out = pl.pallas_call(
            functools.partial(_mlp_kernel_resident, exact_gelu=exact_gelu),
            out_shape=jax.ShapeDtypeStruct((m_pad, d_in), out_dtype),
            grid_spec=pltpu.PrefetchScalarGridSpec(
                num_scalar_prefetch=0,
                grid=(n_m,),
                in_specs=[
                    pl.BlockSpec((tm, d_in), lambda i: (i, 0)),      # x tile
                    pl.BlockSpec((d_in, k128), lambda i: (0, 0)),    # W1 resident
                    pl.BlockSpec((1, k128), lambda i: (0, 0)),       # b1 resident
                    pl.BlockSpec((k128, d_in), lambda i: (0, 0)),    # W2 resident
                    pl.BlockSpec((1, d_in), lambda i: (0, 0)),       # b2 resident
                ],
                out_specs=pl.BlockSpec((tm, d_in), lambda i: (i, 0)),
            ),
            compiler_params=pltpu.CompilerParams(
                dimension_semantics=("parallel",),
                vmem_limit_bytes=vmem_limit,
            ),
            cost_estimate=cost,
        )(x2d, w1, b1, w2, b2)
    else:
        # -------- K-tiled path: (M parallel, d_mlp arbitrary) + f32 acc -------
        tk = _pick_tk(k128, max(_LANE, tk_target))
        tm = max(sub, (min(tm_target, m_round) // sub) * sub)

        def est(tm_, tk_):
            return (2 * tm_ * d_in * cbytes          # x tiles
                    + 2 * d_in * tk_ * cbytes        # W1 chunks
                    + 2 * tk_ * d_in * cbytes        # W2 chunks
                    + 2 * tk_ * 4 + 2 * d_in * 4     # bias tiles
                    + 2 * tm_ * d_in * obytes        # out tiles
                    + tm_ * d_in * 4                 # f32 accumulator
                    + tm_ * tk_ * (4 + cbytes))      # h / g intermediates

        # Shrink tiles until the double-buffered working set fits this chip.
        while est(tm, tk) > int(0.9 * budget):
            if tm > 256:
                tm = max(256, ((tm // 2) // sub) * sub)
            elif tk > 256:
                new_tk = _pick_tk(k128, tk // 2)
                if new_tk == tk:
                    if tm > sub:
                        tm = max(sub, ((tm // 2) // sub) * sub)
                    else:
                        break
                else:
                    tk = new_tk
            elif tm > sub:
                tm = max(sub, ((tm // 2) // sub) * sub)
            elif tk > _LANE:
                new_tk = _pick_tk(k128, tk // 2)
                if new_tk == tk:
                    break
                tk = new_tk
            else:
                break

        m_pad = _round_up(m, tm)
        n_m = m_pad // tm
        n_k = k128 // tk
        if m_pad != m:
            x2d = jnp.pad(x2d, ((0, m_pad - m), (0, 0)))

        vmem_limit = int(min(budget, max(32 * 1024 * 1024, int(1.25 * est(tm, tk)))))
        cost = pl.CostEstimate(
            flops=4 * m_pad * d_in * k128,
            transcendentals=m_pad * k128,
            # Weights are re-streamed once per M-tile in this path.
            bytes_accessed=int(x2d.size * cbytes
                               + n_m * ((w1.size + w2.size) * cbytes + b1.size * 4)
                               + b2.size * 4
                               + m_pad * d_in * obytes),
        )
        # TODO(synk): optionally pipeline_mode=pl.Buffered(3) on the W1/W2 specs
        # for v5e/v6e if traces still show exposed weight DMA at k boundaries.
        out = pl.pallas_call(
            functools.partial(_mlp_kernel_tiled, exact_gelu=exact_gelu),
            out_shape=jax.ShapeDtypeStruct((m_pad, d_in), out_dtype),
            grid_spec=pltpu.PrefetchScalarGridSpec(
                num_scalar_prefetch=0,
                grid=(n_m, n_k),
                in_specs=[
                    pl.BlockSpec((tm, d_in), lambda i, k: (i, 0)),   # x (not re-DMA'd over k)
                    pl.BlockSpec((d_in, tk), lambda i, k: (0, k)),   # W1 column chunk
                    pl.BlockSpec((1, tk), lambda i, k: (0, k)),      # b1 chunk
                    pl.BlockSpec((tk, d_in), lambda i, k: (k, 0)),   # W2 row chunk
                    pl.BlockSpec((1, d_in), lambda i, k: (0, 0)),    # b2
                ],
                out_specs=pl.BlockSpec((tm, d_in), lambda i, k: (i, 0)),
                scratch_shapes=[pltpu.VMEM((tm, d_in), jnp.float32)],
            ),
            compiler_params=pltpu.CompilerParams(
                dimension_semantics=("parallel", "arbitrary"),
                vmem_limit_bytes=vmem_limit,
            ),
            cost_estimate=cost,
        )(x2d, w1, b1, w2, b2)

    if m_pad != m:
        out = out[:m]
    return out.reshape(orig_shape)


# ----------------------------- reference & init --------------------------------

def init_mlp_params(key, input_dim, mlp_dim, dtype=jnp.float32):
    """Deterministic init mirroring nn.Linear's U(-1/sqrt(fan_in), 1/sqrt(fan_in)).
    Stored as [in, out] so the kernel does x @ W (PyTorch weight is [out, in])."""
    k1, k2, k3, k4 = jax.random.split(key, 4)
    bound1 = 1.0 / jnp.sqrt(input_dim)
    bound2 = 1.0 / jnp.sqrt(mlp_dim)
    w1 = jax.random.uniform(k1, (input_dim, mlp_dim), dtype, -bound1, bound1)
    b1 = jax.random.uniform(k2, (mlp_dim,), dtype, -bound1, bound1)
    w2 = jax.random.uniform(k3, (mlp_dim, input_dim), dtype, -bound2, bound2)
    b2 = jax.random.uniform(k4, (input_dim,), dtype, -bound2, bound2)
    return w1, b1, w2, b2


def mlp_block_ref(x, w1, b1, w2, b2, compute_dtype=jnp.bfloat16):
    """Pure-JAX reference mirroring the kernel's bf16-matmul / f32-accumulate numerics."""
    xc = x.astype(compute_dtype)
    h = jnp.dot(xc, w1.astype(compute_dtype),
                preferred_element_type=jnp.float32) + b1.astype(jnp.float32)
    g = jax.nn.gelu(h, approximate=False)
    y = jnp.dot(g.astype(compute_dtype), w2.astype(compute_dtype),
                preferred_element_type=jnp.float32) + b2.astype(jnp.float32)
    return y.astype(x.dtype)


if __name__ == "__main__":
    key = jax.random.PRNGKey(0)
    k_x, k_p = jax.random.split(key)

    # Small shapes consistent with the module: x is [batch, seq, input_dim].
    # seq=15 deliberately exercises the ragged-M padding path.
    batch, seq, input_dim, mlp_dim = 2, 15, 128, 512
    x = jax.random.normal(k_x, (batch, seq, input_dim), dtype=jnp.float32)
    w1, b1, w2, b2 = init_mlp_params(k_p, input_dim, mlp_dim)

    # One-time weight preparation (bf16 cast + lane padding outside the hot path).
    pw1, pb1, pw2, pb2 = prepare_mlp_params(w1, b1, w2, b2)

    y_ref = mlp_block_ref(x, w1, b1, w2, b2)

    # Path 1: weights-resident (1-D grid over tokens; weights DMA'd once).
    fn_res = jax.jit(mlp_block)
    y_res = fn_res(x, pw1, pb1, pw2, pb2)
    jax.block_until_ready(y_res)
    assert y_res.shape == x.shape
    err_res = float(jnp.max(jnp.abs(y_res - y_ref)))
    assert jnp.allclose(y_res, y_ref, atol=5e-3, rtol=5e-3), f"resident mismatch: {err_res}"

    # Path 2: force the K-tiled accumulator path at toy tile sizes to exercise
    # the (parallel M, arbitrary d_mlp) grid and pl.when init/store protocol.
    fn_tiled = jax.jit(functools.partial(
        mlp_block, max_resident_weight_bytes=0, tile_m=16, tile_k=128))
    y_til = fn_tiled(x, pw1, pb1, pw2, pb2)
    jax.block_until_ready(y_til)
    err_til = float(jnp.max(jnp.abs(y_til - y_ref)))
    assert jnp.allclose(y_til, y_ref, atol=5e-3, rtol=5e-3), f"tiled mismatch: {err_til}"

    print("KERNEL_OK")
</pallas_src>

<mosaic_0001>
module attributes {stable_mosaic.version = 11 : i64} {
  func.func @_mlp_kernel_resident(%arg0: i32, %arg1: memref<16x128xbf16, #tpu.memory_space<vmem>>, %arg2: memref<128x512xbf16, #tpu.memory_space<vmem>>, %arg3: memref<1x512xf32, #tpu.memory_space<vmem>>, %arg4: memref<512x128xbf16, #tpu.memory_space<vmem>>, %arg5: memref<1x128xf32, #tpu.memory_space<vmem>>, %arg6: memref<16x128xf32, #tpu.memory_space<vmem>>) attributes {dimension_semantics = [#tpu.dimension_semantics<parallel>], iteration_bounds = array<i64: 2>, scalar_prefetch = 0 : i64, scratch_operands = 0 : i64, tpu.core_type = #tpu.core_type<tc>, window_params = [{transform_indices = @transform_0, window_bounds = array<i64: 16, 128>}, {pipeline_mode = #tpu.pipeline_mode<synchronous>, transform_indices = @transform_1, window_bounds = array<i64: 128, 512>}, {pipeline_mode = #tpu.pipeline_mode<synchronous>, transform_indices = @transform_2, window_bounds = array<i64: 1, 512>}, {pipeline_mode = #tpu.pipeline_mode<synchronous>, transform_indices = @transform_3, window_bounds = array<i64: 512, 128>}, {pipeline_mode = #tpu.pipeline_mode<synchronous>, transform_indices = @transform_4, window_bounds = array<i64: 1, 128>}, {transform_indices = @transform_5, window_bounds = array<i64: 16, 128>}]} {
    %c0 = arith.constant 0 : index
    %c0_0 = arith.constant 0 : index
    %0 = vector.load %arg1[%c0, %c0_0] : memref<16x128xbf16, #tpu.memory_space<vmem>>, vector<16x128xbf16>
    %c0_1 = arith.constant 0 : index
    %c0_2 = arith.constant 0 : index
    %1 = vector.load %arg2[%c0_1, %c0_2] : memref<128x512xbf16, #tpu.memory_space<vmem>>, vector<128x512xbf16>
    %cst = arith.constant dense<0.000000e+00> : vector<16x512xf32>
    %2 = tpu.matmul %0, %1, %cst {dimension_numbers = #tpu.dot_dimension_numbers<[1], [0], [0], [1], [0, 0, 1, 1], [], []>} : vector<16x128xbf16>, vector<128x512xbf16>, vector<16x512xf32> -> vector<16x512xf32>
    %c0_3 = arith.constant 0 : index
    %c0_4 = arith.constant 0 : index
    %3 = vector.load %arg3[%c0_3, %c0_4] : memref<1x512xf32, #tpu.memory_space<vmem>>, vector<1x512xf32>
    %4 = vector.broadcast %3 : vector<1x512xf32> to vector<16x512xf32>
    %5 = arith.addf %2, %4 : vector<16x512xf32>
    %cst_5 = arith.constant 5.000000e-01 : f32
    %6 = vector.broadcast %cst_5 : f32 to vector<16x512xf32>
    %7 = arith.mulf %6, %5 : vector<16x512xf32>
    %cst_6 = arith.constant 0.707106769 : f32
    %8 = vector.broadcast %cst_6 : f32 to vector<16x512xf32>
    %9 = arith.mulf %5, %8 : vector<16x512xf32>
    %10 = math.erf %9 : vector<16x512xf32>
    %cst_7 = arith.constant 1.000000e+00 : f32
    %11 = vector.broadcast %cst_7 : f32 to vector<16x512xf32>
    %12 = arith.addf %11, %10 : vector<16x512xf32>
    %13 = arith.mulf %7, %12 : vector<16x512xf32>
    %14 = arith.truncf %13 : vector<16x512xf32> to vector<16x512xbf16>
    %c0_8 = arith.constant 0 : index
    %c0_9 = arith.constant 0 : index
    %15 = vector.load %arg4[%c0_8, %c0_9] : memref<512x128xbf16, #tpu.memory_space<vmem>>, vector<512x128xbf16>
    %cst_10 = arith.constant dense<0.000000e+00> : vector<16x128xf32>
    %16 = tpu.matmul %14, %15, %cst_10 {dimension_numbers = #tpu.dot_dimension_numbers<[1], [0], [0], [1], [0, 0, 1, 1], [], []>} : vector<16x512xbf16>, vector<512x128xbf16>, vector<16x128xf32> -> vector<16x128xf32>
    %c0_11 = arith.constant 0 : index
    %c0_12 = arith.constant 0 : index
    %17 = vector.load %arg5[%c0_11, %c0_12] : memref<1x128xf32, #tpu.memory_space<vmem>>, vector<1x128xf32>
    %18 = vector.broadcast %17 : vector<1x128xf32> to vector<16x128xf32>
    %19 = arith.addf %16, %18 : vector<16x128xf32>
    %c0_13 = arith.constant 0 : index
    %c0_14 = arith.constant 0 : index
    %20 = vector.load %arg6[%c0_13, %c0_14] : memref<16x128xf32, #tpu.memory_space<vmem>>, vector<16x128xf32>
    tpu.vector_store %arg6[%c0_13, %c0_14], %19 {strides = array<i32>} : memref<16x128xf32, #tpu.memory_space<vmem>>, vector<16x128xf32>,
    return
  }
  func.func @transform_0(%arg0: i32) -> (i32, i32) {
    %c0_i32 = arith.constant 0 : i32
    %c0_i32_0 = arith.constant 0 : i32
    return %arg0, %c0_i32 : i32, i32
  }
  func.func @transform_1(%arg0: i32) -> (i32, i32) {
    %c0_i32 = arith.constant 0 : i32
    %c0_i32_0 = arith.constant 0 : i32
    %c0_i32_1 = arith.constant 0 : i32
    return %c0_i32, %c0_i32_0 : i32, i32
  }
  func.func @transform_2(%arg0: i32) -> (i32, i32) {
    %c0_i32 = arith.constant 0 : i32
    %c0_i32_0 = arith.constant 0 : i32
    %c0_i32_1 = arith.constant 0 : i32
    return %c0_i32, %c0_i32_0 : i32, i32
  }
  func.func @transform_3(%arg0: i32) -> (i32, i32) {
    %c0_i32 = arith.constant 0 : i32
    %c0_i32_0 = arith.constant 0 : i32
    %c0_i32_1 = arith.constant 0 : i32
    return %c0_i32, %c0_i32_0 : i32, i32
  }
  func.func @transform_4(%arg0: i32) -> (i32, i32) {
    %c0_i32 = arith.constant 0 : i32
    %c0_i32_0 = arith.constant 0 : i32
    %c0_i32_1 = arith.constant 0 : i32
    return %c0_i32, %c0_i32_0 : i32, i32
  }
  func.func @transform_5(%arg0: i32) -> (i32, i32) {
    %c0_i32 = arith.constant 0 : i32
    %c0_i32_0 = arith.constant 0 : i32
    return %arg0, %c0_i32 : i32, i32
  }
}

</mosaic_0001>

<llo_original>
// kernel: mlp_block.1
$region0: #{mlp_block.1}
  #allocation0 [shape = 'u32[]', space=smem, size = 0x4, offset = 0x4, fixed_abs, tag = 'smem constant byte address 0x4 - core index']
  #allocation1 [shape = 'u32[144,128]{1,0:T(1,128)}', space=vmem, size = 0x12000, scoped, tag = 'internal scratch']
  %s0 = inlined_call_operand.vmem [shape: bf16[32,128], index: 0, kind: input, shape index: {}]
  %s1 = inlined_call_operand.hbm [shape: bf16[128,512], index: 1, kind: input, shape index: {}]
  %s2 = inlined_call_operand.vmem [shape: f32[1,512], index: 2, kind: input, shape index: {}]
  %s3 = inlined_call_operand.hbm [shape: bf16[512,128], index: 3, kind: input, shape index: {}]
  %s4 = inlined_call_operand.vmem [shape: f32[1,128], index: 4, kind: input, shape index: {}]
  %s5 = inlined_call_operand.vmem [shape: f32[32,128], index: 5, kind: output, shape index: {}]
  %s6 = sld [smem:[#allocation0]]
  $region61: #{mlp_block.1} parent=0
    _
  %s8 = ssub.s32 1, %s6
  %s9 = scalar_select 0, %s8, %s6
  $region1: #{mlp_block.1} parent=0
    #allocation2 [shape = 'u8[131072]{0}', space=vmem, size = 0x20000, scoped, tag = 'input window, operand 1, single buffered']
    #allocation3 [shape = 's32[2]{0}', space=sflag, size = 0x8, scoped, tag = 'scoped memory for mlp_block.1']
    #allocation4 [shape = 'u8[131072]{0}', space=vmem, size = 0x20000, scoped, tag = 'input window, operand 3, single buffered']
    #allocation5 [shape = 's32[1]{0}', space=sflag, size = 0x4, scoped, tag = 'scoped memory for mlp_block.1']
    %10 = vsyncpa [#allocation3], 0
    %11 = vsyncpa [#allocation5], 0
    loop: start=0, step=1, limit=4
    $region2: #{mlp_block.1} parent=1 // loop_pre_header
      _
    $region3: #{mlp_block.1} parent=1 // loop_header
      %s13 = sphi 0, %s17
      %p14 = scmp.ge.s32.totalorder %s13, 4
      %s23 = sphi 0, %s25
      %s26 = sphi 0, %s23
      %s27 = sphi 0, %s26
      %s43 = sphi 0, %s27
      %s47 = sphi 0, %s47
      %s49 = sphi 0, %s47
      %s50 = sphi 0, %s49
      %s64 = sphi 0, %s50
      %s68 = sphi 0, %s68
      %s70 = sphi 0, %s68
      %s71 = sphi 0, %s70
      %s85 = sphi 0, %s71
      %s89 = sphi 0, %s89
      %s91 = sphi 0, %s89
      %s92 = sphi 0, %s91
      %s106 = sphi 0, %s92
      %s110 = sphi 0, %s110
      %s112 = sphi 0, %s110
      %s113 = sphi 0, %s112
      %s127 = sphi 0, %s113
      %s133 = sphi 0, %s135
      %s136 = sphi 0, %s133
      %s137 = sphi 0, %s136
      %s153 = sphi 0, %s137
    $region4: #{mlp_block.1} parent=1 // loop_header_branch
      %16 = sbr.rel (%p14) target = $region8
    $region5: #{mlp_block.1} parent=1 // loop_body
      %s18 = ssub.s32 %s13, 1
      %s19 = ssub.s32 %s13, 2
      %s20 = sadd.s32 %s13, 1
      %s21 = ssub.s32 %s13, %s20
      %p22 = scmp.eq.s32.totalorder %s21, 0
      %s24 = sadd.s32 %s23, 1
      %s25 = scalar_select %p22, %s23, %s24
      %p28 = pneg %p22
      %p29 = scmp.eq.s32.totalorder %s13, 1
      %p30 = por %p28, %p29
      %p31 = scmp.ne.s32.totalorder %s23, %s26
      %p32 = scmp.eq.s32.totalorder %s13, 0
      %p33 = por %p31, %p32
      %p34 = scmp.ne.s32.totalorder %s23, %s26
      %p35 = scmp.eq.s32.totalorder %s18, 1
      %p36 = por %p34, %p35
      %p37 = scmp.ne.s32.totalorder %s26, %s27
      %p38 = scmp.eq.s32.totalorder %s18, 0
      %p39 = por %p37, %p38
      %p40 = scmp.ne.s32.totalorder %s26, %s27
      %p41 = scmp.eq.s32.totalorder %s19, 1
      %p42 = por %p40, %p41
      %p44 = scmp.ne.s32.totalorder %s27, %s43
      %p45 = scmp.eq.s32.totalorder %s19, 0
      %p46 = por %p44, %p45
      %s48 = sadd.s32 %s47, 1
      %p51 = scmp.eq.s32.totalorder %s13, 1
      %p52 = scmp.ne.s32.totalorder %s47, %s49
      %p53 = scmp.eq.s32.totalorder %s13, 0
      %p54 = por %p52, %p53
      %p55 = scmp.ne.s32.totalorder %s47, %s49
      %p56 = scmp.eq.s32.totalorder %s18, 1
      %p57 = por %p55, %p56
      %p58 = scmp.ne.s32.totalorder %s49, %s50
      %p59 = scmp.eq.s32.totalorder %s18, 0
      %p60 = por %p58, %p59
      %p61 = scmp.ne.s32.totalorder %s49, %s50
      %p62 = scmp.eq.s32.totalorder %s19, 1
      %p63 = por %p61, %p62
      %p65 = scmp.ne.s32.totalorder %s50, %s64
      %p66 = scmp.eq.s32.totalorder %s19, 0
      %p67 = por %p65, %p66
      %s69 = sadd.s32 %s68, 1
      %p72 = scmp.eq.s32.totalorder %s13, 1
      %p73 = scmp.ne.s32.totalorder %s68, %s70
      %p74 = scmp.eq.s32.totalorder %s13, 0
      %p75 = por %p73, %p74
      %p76 = scmp.ne.s32.totalorder %s68, %s70
      %p77 = scmp.eq.s32.totalorder %s18, 1
      %p78 = por %p76, %p77
      %p79 = scmp.ne.s32.totalorder %s70, %s71
      %p80 = scmp.eq.s32.totalorder %s18, 0
      %p81 = por %p79, %p80
      %p82 = scmp.ne.s32.totalorder %s70, %s71
      %p83 = scmp.eq.s32.totalorder %s19, 1
      %p84 = por %p82, %p83
      %p86 = scmp.ne.s32.totalorder %s71, %s85
      %p87 = scmp.eq.s32.totalorder %s19, 0
      %p88 = por %p86, %p87
      %s90 = sadd.s32 %s89, 1
      %p93 = scmp.eq.s32.totalorder %s13, 1
      %p94 = scmp.ne.s32.totalorder %s89, %s91
      %p95 = scmp.eq.s32.totalorder %s13, 0
      %p96 = por %p94, %p95
      %p97 = scmp.ne.s32.totalorder %s89, %s91
      %p98 = scmp.eq.s32.totalorder %s18, 1
      %p99 = por %p97, %p98
      %p100 = scmp.ne.s32.totalorder %s91, %s92
      %p101 = scmp.eq.s32.totalorder %s18, 0
      %p102 = por %p100, %p101
      %p103 = scmp.ne.s32.totalorder %s91, %s92
      %p104 = scmp.eq.s32.totalorder %s19, 1
      %p105 = por %p103, %p104
      %p107 = scmp.ne.s32.totalorder %s92, %s106
      %p108 = scmp.eq.s32.totalorder %s19, 0
      %p109 = por %p107, %p108
      %s111 = sadd.s32 %s110, 1
      %p114 = scmp.eq.s32.totalorder %s13, 1
      %p115 = scmp.ne.s32.totalorder %s110, %s112
      %p116 = scmp.eq.s32.totalorder %s13, 0
      %p117 = por %p115, %p116
      %p118 = scmp.ne.s32.totalorder %s110, %s112
      %p119 = scmp.eq.s32.totalorder %s18, 1
      %p120 = por %p118, %p119
      %p121 = scmp.ne.s32.totalorder %s112, %s113
      %p122 = scmp.eq.s32.totalorder %s18, 0
      %p123 = por %p121, %p122
      %p124 = scmp.ne.s32.totalorder %s112, %s113
      %p125 = scmp.eq.s32.totalorder %s19, 1
      %p126 = por %p124, %p125
      %p128 = scmp.ne.s32.totalorder %s113, %s127
      %p129 = scmp.eq.s32.totalorder %s19, 0
      %p130 = por %p128, %p129
      %s131 = ssub.s32 %s13, %s20
      %p132 = scmp.eq.s32.totalorder %s131, 0
      %s134 = sadd.s32 %s133, 1
      %s135 = scalar_select %p132, %s133, %s134
      %p138 = pneg %p132
      %p139 = scmp.eq.s32.totalorder %s13, 1
      %p140 = por %p138, %p139
      %p141 = scmp.ne.s32.totalorder %s133, %s136
      %p142 = scmp.eq.s32.totalorder %s13, 0
      %p143 = por %p141, %p142
      %p144 = scmp.ne.s32.totalorder %s133, %s136
      %p145 = scmp.eq.s32.totalorder %s18, 1
      %p146 = por %p144, %p145
      %p147 = scmp.ne.s32.totalorder %s136, %s137
      %p148 = scmp.eq.s32.totalorder %s18, 0
      %p149 = por %p147, %p148
      %p150 = scmp.ne.s32.totalorder %s136, %s137
      %p151 = scmp.eq.s32.totalorder %s19, 1
      %p152 = por %p150, %p151
      %p154 = scmp.ne.s32.totalorder %s137, %s153
      %p155 = scmp.eq.s32.totalorder %s19, 0
      %p156 = por %p154, %p155
      %p157 = scmp.le.s32.totalorder 1, %s13
      %p158 = scmp.lt.s32.totalorder %s13, 3
      %p159 = pnand %p157, %p158
      %p160 = pneg %p159
      // Predicated region
      $region9: #{mlp_block.1} parent=5 // pred_check
        _
      $region10: #{mlp_block.1} parent=5 // pred_check_branch
        %162 = sbr.rel (%p159) target = $region12
      $region11: #{mlp_block.1} parent=5 // pred_region
        %s163 = ssub.s32 %s13, 1
        // Predicated region
        $region13: #{mlp_block.1} parent=11 // pred_check
          %p164 = pneg %p60
        $region14: #{mlp_block.1} parent=11 // pred_check_branch
          %166 = sbr.rel (%p164) target = $region16
        $region15: #{mlp_block.1} parent=11 // pred_region
          %s168 = ssub.s32 4096, 4096
          %169 = vsyncadd [#allocation3], %s168
          %s170 = sshll.u32 [#allocation2], 4
          %s171 = int_to_ptr.vmem [resolvable:$true] %s170
          %176 = dma.hbm_to_vmem [thread:$0]  %s1, 4096, %s171, [#allocation3], 256, 256, 16
        $region16: #{mlp_block.1} parent=11 // pred_fallthru
          _
        // Predicated region
        $region17: #{mlp_block.1} parent=11 // pred_check
          %p177 = pneg %p81
        $region18: #{mlp_block.1} parent=11 // pred_check_branch
          %179 = sbr.rel (%p177) target = $region20
        $region19: #{mlp_block.1} parent=11 // pred_region
          _
        $region20: #{mlp_block.1} parent=11 // pred_fallthru
          _
        // Predicated region
        $region21: #{mlp_block.1} parent=11 // pred_check
          %p180 = pneg %p102
        $region22: #{mlp_block.1} parent=11 // pred_check_branch
          %182 = sbr.rel (%p180) target = $region24
        $region23: #{mlp_block.1} parent=11 // pred_region
          %s184 = ssub.s32 4096, 4096
          %185 = vsyncadd [#allocation5], %s184
          %s186 = sshll.u32 [#allocation4], 4
          %s187 = int_to_ptr.vmem [resolvable:$true] %s186
          %192 = dma.hbm_to_vmem [thread:$0]  %s3, 4096, %s187, [#allocation5], 64, 64, 4
        $region24: #{mlp_block.1} parent=11 // pred_fallthru
          _
        // Predicated region
        $region25: #{mlp_block.1} parent=11 // pred_check
          %p193 = pneg %p123
        $region26: #{mlp_block.1} parent=11 // pred_check_branch
          %195 = sbr.rel (%p193) target = $region28
        $region27: #{mlp_block.1} parent=11 // pred_region
          _
        $region28: #{mlp_block.1} parent=11 // pred_fallthru
          _
      $region12: #{mlp_block.1} parent=5 // pred_fallthru
        _
      %p196 = scmp.lt.s32.totalorder %s13, 2
      // Predicated region
      $region29: #{mlp_block.1} parent=5 // pred_check
        %p197 = pneg %p196
      $region30: #{mlp_block.1} parent=5 // pred_check_branch
        %199 = sbr.rel (%p197) target = $region32
      $region31: #{mlp_block.1} parent=5 // pred_region
        // Predicated region
        $region33: #{mlp_block.1} parent=31 // pred_check
          %p200 = pneg %p33
        $region34: #{mlp_block.1} parent=31 // pred_check_branch
          %202 = sbr.rel (%p200) target = $region36
        $region35: #{mlp_block.1} parent=31 // pred_region
          %s203 = smul.u32 2, %s13
          %p204 = scmp.lt.s32.totalorder %s203, 3
          %s205 = scalar_select %p204, %s203, 3
          %s206 = smul.addr %s205, 4
          %s207 = scalar_lea.vmem %s0, %s206
          %s208 = smul.u32 2, %s13
        $region36: #{mlp_block.1} parent=31 // pred_fallthru
          _
      $region32: #{mlp_block.1} parent=5 // pred_fallthru
        _
      %p209 = scmp.le.s32.totalorder 1, %s13
      %p210 = scmp.lt.s32.totalorder %s13, 3
      %p211 = pnand %p209, %p210
      %p212 = pneg %p211
      // Predicated region
      $region37: #{mlp_block.1} parent=5 // pred_check
        _
      $region38: #{mlp_block.1} parent=5 // pred_check_branch
        %214 = sbr.rel (%p211) target = $region40
      $region39: #{mlp_block.1} parent=5 // pred_region
        %s215 = ssub.s32 %s13, 1
        // Predicated region
        $region41: #{mlp_block.1} parent=39 // pred_check
          %p216 = pneg %p60
        $region42: #{mlp_block.1} parent=39 // pred_check_branch
          %218 = sbr.rel (%p216) target = $region44
        $region43: #{mlp_block.1} parent=39 // pred_region
          %219 = dma.done [#allocation3], 4096
        $region44: #{mlp_block.1} parent=39 // pred_fallthru
          _
        // Predicated region
        $region45: #{mlp_block.1} parent=39 // pred_check
          %p220 = pneg %p102
        $region46: #{mlp_block.1} parent=39 // pred_check_branch
          %222 = sbr.rel (%p220) target = $region48
        $region47: #{mlp_block.1} parent=39 // pred_region
          %223 = dma.done [#allocation5], 4096
        $region48: #{mlp_block.1} parent=39 // pred_fallthru
          _
        %s224 = smul.u32 2, %s18
        %p225 = scmp.lt.s32.totalorder %s224, 3
        %s226 = scalar_select %p225, %s224, 3
        %s227 = smul.addr %s226, 4
        %s228 = scalar_lea.vmem %s0, %s227
        %p229 = pneg %p39
        %p230 = pneg %p36
        %p231 = pneg %p60
        %p232 = pneg %p57
        %p233 = pneg %p81
        %p234 = pneg %p78
        %p235 = pneg %p102
        %p236 = pneg %p99
        %p237 = pneg %p123
        %p238 = pneg %p120
        %p239 = pneg %p149
        %p240 = pneg %p146
        %s241 = smul.u32 2, %s18
        %p242 = scmp.lt.s32.totalorder %s241, 3
        %s243 = scalar_select %p242, %s241, 3
        %s244 = smul.addr %s243, 8
        %s245 = scalar_lea.vmem %s5, %s244
        %s246 = smul.u32 2, %s18
        %p247 = scmp.lt.s32.totalorder %s246, 3
        %s248 = scalar_select %p247, %s246, 3
        %s249 = smul.addr %s248, 4
        %s250 = scalar_lea.vmem %s0, %s249
        %s251 = smul.u32 2, %s18
        %s252 = smul.u32 2, %s18
        %p253 = scmp.lt.s32.totalorder %s252, 3
        %s254 = scalar_select %p253, %s252, 3
        %s255 = smul.addr %s254, 8
        %s256 = scalar_lea.vmem %s5, %s255
        %s257 = smul.u32 2, %s18
        %v259 = vld [vmem:[%s250] sm:$0xf]
        %v260 = vld [vmem:[%s250 + $0x4] sm:$0xf]
        %v261 = vld [vmem:[#allocation2] sm:$0xff]
        %v262 = vld [vmem:[#allocation2 + $0x8] sm:$0xff]
        %v263 = vld [vmem:[#allocation2 + $0x10] sm:$0xff]
        %v264 = vld [vmem:[#allocation2 + $0x18] sm:$0xff]
        %v265 = vld [vmem:[#allocation2 + $0x20] sm:$0xff]
        %v266 = vld [vmem:[#allocation2 + $0x28] sm:$0xff]
        %v267 = vld [vmem:[#allocation2 + $0x30] sm:$0xff]
        %v268 = vld [vmem:[#allocation2 + $0x38] sm:$0xff]
        %v269 = vld [vmem:[#allocation2 + $0x40] sm:$0xff]
        %v270 = vld [vmem:[#allocation2 + $0x48] sm:$0xff]
        %v271 = vld [vmem:[#allocation2 + $0x50] sm:$0xff]
        %v272 = vld [vmem:[#allocation2 + $0x58] sm:$0xff]
        %v273 = vld [vmem:[#allocation2 + $0x60] sm:$0xff]
        %v274 = vld [vmem:[#allocation2 + $0x68] sm:$0xff]
        %v275 = vld [vmem:[#allocation2 + $0x70] sm:$0xff]
        %v276 = vld [vmem:[#allocation2 + $0x78] sm:$0xff]
        %v277 = vld [vmem:[#allocation2 + $0x80] sm:$0xff]
        %v278 = vld [vmem:[#allocation2 + $0x88] sm:$0xff]
        %v279 = vld [vmem:[#allocation2 + $0x90] sm:$0xff]
        %v280 = vld [vmem:[#allocation2 + $0x98] sm:$0xff]
        %v281 = vld [vmem:[#allocation2 + $0xa0] sm:$0xff]
        %v282 = vld [vmem:[#allocation2 + $0xa8] sm:$0xff]
        %v283 = vld [vmem:[#allocation2 + $0xb0] sm:$0xff]
        %v284 = vld [vmem:[#allocation2 + $0xb8] sm:$0xff]
        %v285 = vld [vmem:[#allocation2 + $0xc0] sm:$0xff]
        %v286 = vld [vmem:[#allocation2 + $0xc8] sm:$0xff]
        %v287 = vld [vmem:[#allocation2 + $0xd0] sm:$0xff]
        %v288 = vld [vmem:[#allocation2 + $0xd8] sm:$0xff]
        %v289 = vld [vmem:[#allocation2 + $0xe0] sm:$0xff]
        %v290 = vld [vmem:[#allocation2 + $0xe8] sm:$0xff]
        %v291 = vld [vmem:[#allocation2 + $0xf0] sm:$0xff]
        %v292 = vld [vmem:[#allocation2 + $0xf8] sm:$0xff]
        %v293 = vld [vmem:[%s2] sm:$0xf]
        %v295 = vlaneseq
        %v296 = vshrl.u32 %v295, 7
        %v297 = vsub.s32 0, %v296
        %v298 = vrot.slane %v293, %v297
        %v299 = vlaneseq
        %v300 = vshrl.u32 %v299, 7
        %v301 = vsub.s32 1, %v300
        %v302 = vrot.slane %v293, %v301
        %v303 = vlaneseq
        %v304 = vshrl.u32 %v303, 7
        %v305 = vsub.s32 2, %v304
        %v306 = vrot.slane %v293, %v305
        %v307 = vlaneseq
        %v308 = vshrl.u32 %v307, 7
        %v309 = vsub.s32 3, %v308
        %v310 = vrot.slane %v293, %v309
        %v317 = vunpack.c.l.b16 %v259
        %v318 = vunpack.c.l.b16 %v260
        %v319 = vpack.c.b16 %v318, %v317
        %v353 = vunpack.c.l.b16 %v261
        %v354 = vunpack.c.h.b16 %v261
        %v355 = vunpack.c.l.b16 %v262
        %v356 = vunpack.c.h.b16 %v262
        %v357 = vunpack.c.l.b16 %v263
        %v358 = vunpack.c.h.b16 %v263
        %v359 = vunpack.c.l.b16 %v264
        %v360 = vunpack.c.h.b16 %v264
        %v361 = vunpack.c.l.b16 %v265
        %v362 = vunpack.c.h.b16 %v265
        %v363 = vunpack.c.l.b16 %v266
        %v364 = vunpack.c.h.b16 %v266
        %v365 = vunpack.c.l.b16 %v267
        %v366 = vunpack.c.h.b16 %v267
        %v367 = vunpack.c.l.b16 %v268
        %v368 = vunpack.c.h.b16 %v268
        %v369 = vunpack.c.l.b16 %v269
        %v370 = vunpack.c.h.b16 %v269
        %v371 = vunpack.c.l.b16 %v270
        %v372 = vunpack.c.h.b16 %v270
        %v373 = vunpack.c.l.b16 %v271
        %v374 = vunpack.c.h.b16 %v271
        %v375 = vunpack.c.l.b16 %v272
        %v376 = vunpack.c.h.b16 %v272
        %v377 = vunpack.c.l.b16 %v273
        %v378 = vunpack.c.h.b16 %v273
        %v379 = vunpack.c.l.b16 %v274
        %v380 = vunpack.c.h.b16 %v274
        %v381 = vunpack.c.l.b16 %v275
        %v382 = vunpack.c.h.b16 %v275
        %v383 = vunpack.c.l.b16 %v276
        %v384 = vunpack.c.h.b16 %v276
        %v385 = vunpack.c.l.b16 %v277
        %v386 = vunpack.c.h.b16 %v277
        %v387 = vunpack.c.l.b16 %v278
        %v388 = vunpack.c.h.b16 %v278
        %v389 = vunpack.c.l.b16 %v279
        %v390 = vunpack.c.h.b16 %v279
        %v391 = vunpack.c.l.b16 %v280
        %v392 = vunpack.c.h.b16 %v280
        %v393 = vunpack.c.l.b16 %v281
        %v394 = vunpack.c.h.b16 %v281
        %v395 = vunpack.c.l.b16 %v282
        %v396 = vunpack.c.h.b16 %v282
        %v397 = vunpack.c.l.b16 %v283
        %v398 = vunpack.c.h.b16 %v283
        %v399 = vunpack.c.l.b16 %v284
        %v400 = vunpack.c.h.b16 %v284
        %v401 = vunpack.c.l.b16 %v285
        %v402 = vunpack.c.h.b16 %v285
        %v403 = vunpack.c.l.b16 %v286
        %v404 = vunpack.c.h.b16 %v286
        %v405 = vunpack.c.l.b16 %v287
        %v406 = vunpack.c.h.b16 %v287
        %v407 = vunpack.c.l.b16 %v288
        %v408 = vunpack.c.h.b16 %v288
        %v409 = vunpack.c.l.b16 %v289
        %v410 = vunpack.c.h.b16 %v289
        %v411 = vunpack.c.l.b16 %v290
        %v412 = vunpack.c.h.b16 %v290
        %v413 = vunpack.c.l.b16 %v291
        %v414 = vunpack.c.h.b16 %v291
        %v415 = vunpack.c.l.b16 %v292
        %v416 = vunpack.c.h.b16 %v292
        %v417 = vpack.c.b16 %v357, %v353
        %v418 = vpack.c.b16 %v358, %v354
        %v419 = vpack.c.b16 %v359, %v355
        %v420 = vpack.c.b16 %v360, %v356
        %v421 = vpack.c.b16 %v365, %v361
        %v422 = vpack.c.b16 %v366, %v362
        %v423 = vpack.c.b16 %v367, %v363
        %v424 = vpack.c.b16 %v368, %v364
        %v425 = vpack.c.b16 %v373, %v369
        %v426 = vpack.c.b16 %v374, %v370
        %v427 = vpack.c.b16 %v375, %v371
        %v428 = vpack.c.b16 %v376, %v372
        %v429 = vpack.c.b16 %v381, %v377
        %v430 = vpack.c.b16 %v382, %v378
        %v431 = vpack.c.b16 %v383, %v379
        %v432 = vpack.c.b16 %v384, %v380
        %v433 = vpack.c.b16 %v389, %v385
        %v434 = vpack.c.b16 %v390, %v386
        %v435 = vpack.c.b16 %v391, %v387
        %v436 = vpack.c.b16 %v392, %v388
        %v437 = vpack.c.b16 %v397, %v393
        %v438 = vpack.c.b16 %v398, %v394
        %v439 = vpack.c.b16 %v399, %v395
        %v440 = vpack.c.b16 %v400, %v396
        %v441 = vpack.c.b16 %v405, %v401
        %v442 = vpack.c.b16 %v406, %v402
        %v443 = vpack.c.b16 %v407, %v403
        %v444 = vpack.c.b16 %v408, %v404
        %v445 = vpack.c.b16 %v413, %v409
        %v446 = vpack.c.b16 %v414, %v410
        %v447 = vpack.c.b16 %v415, %v411
        %v448 = vpack.c.b16 %v416, %v412
        %481 = vmatprep.subr.bf16.mxu0 %v446
        %482 = vmatpush1.bf16.msra.mxu0 %v445
        %483 = vmatprep.subr.bf16.mxu0 %v442
        %484 = vmatpush1.bf16.msra.mxu0 %v441
        %485 = vmatprep.subr.bf16.mxu0 %v438
        %486 = vmatpush1.bf16.msra.mxu0 %v437
        %487 = vmatprep.subr.bf16.mxu0 %v434
        %488 = vmatpush1.bf16.msra.mxu0 %v433
        %489 = vmatprep.subr.bf16.mxu0 %v430
        %490 = vmatpush1.bf16.msra.mxu0 %v429
        %491 = vmatprep.subr.bf16.mxu0 %v426
        %492 = vmatpush1.bf16.msra.mxu0 %v425
        %493 = vmatprep.subr.bf16.mxu0 %v422
        %494 = vmatpush1.bf16.msra.mxu0 %v421
        %495 = vmatprep.subr.bf16.mxu0 %v418
        %496 = vmatpush1.bf16.msra.mxu0 %v417
        %497 = vmatprep.subr.bf16.mxu0 0
        %498 = vmatpush2.bf16.msra.mxu0 0
        %499 = vmatprep.subr.bf16.mxu0 0
        %500 = vmatpush2.bf16.msra.mxu0 0
        %501 = vmatprep.subr.bf16.mxu0 0
        %502 = vmatpush2.bf16.msra.mxu0 0
        %503 = vmatprep.subr.bf16.mxu0 0
        %504 = vmatpush2.bf16.msra.mxu0 0
        %505 = vmatprep.subr.bf16.mxu0 0
        %506 = vmatpush2.bf16.msra.mxu0 0
        %507 = vmatprep.subr.bf16.mxu0 0
        %508 = vmatpush2.bf16.msra.mxu0 0
        %509 = vmatprep.subr.bf16.mxu0 0
        %510 = vmatpush2.bf16.msra.mxu0 0
        %511 = vmatprep.subr.bf16.mxu0 0
        %512 = vmatpush2.bf16.msra.mxu0 0
        %513 = vmatprep.mubr.bf16.mxu0 0
        %514 = vmatmul.mubr.bf16.gmra.mxu0 %v319
        %v515 = vpop.f32.mrf.mxu0
        %v516 = vadd.f32 %v298, %v515
        %v517 = vpop.f32.mrf.mxu0
        %v518 = vadd.f32 %v302, %v517
        %v519 = vpop.f32.mrf.mxu0
        %v520 = vadd.f32 %v298, %v519
        %v521 = vpop.f32.mrf.mxu0
        %v522 = vadd.f32 %v302, %v521
        %523 = vdwg.mxu0
        %524 = vmatprep.subr.bf16.mxu0 %v448
        %525 = vmatpush1.bf16.msra.mxu0 %v447
        %526 = vmatprep.subr.bf16.mxu0 %v444
        %527 = vmatpush1.bf16.msra.mxu0 %v443
        %528 = vmatprep.subr.bf16.mxu0 %v440
        %529 = vmatpush1.bf16.msra.mxu0 %v439
        %530 = vmatprep.subr.bf16.mxu0 %v436
        %531 = vmatpush1.bf16.msra.mxu0 %v435
        %532 = vmatprep.subr.bf16.mxu0 %v432
        %533 = vmatpush1.bf16.msra.mxu0 %v431
        %534 = vmatprep.subr.bf16.mxu0 %v428
        %535 = vmatpush1.bf16.msra.mxu0 %v427
        %536 = vmatprep.subr.bf16.mxu0 %v424
        %537 = vmatpush1.bf16.msra.mxu0 %v423
        %538 = vmatprep.subr.bf16.mxu0 %v420
        %539 = vmatpush1.bf16.msra.mxu0 %v419
        %540 = vmatprep.subr.bf16.mxu0 0
        %541 = vmatpush2.bf16.msra.mxu0 0
        %542 = vmatprep.subr.bf16.mxu0 0
        %543 = vmatpush2.bf16.msra.mxu0 0
        %544 = vmatprep.subr.bf16.mxu0 0
        %545 = vmatpush2.bf16.msra.mxu0 0
        %546 = vmatprep.subr.bf16.mxu0 0
        %547 = vmatpush2.bf16.msra.mxu0 0
        %548 = vmatprep.subr.bf16.mxu0 0
        %549 = vmatpush2.bf16.msra.mxu0 0
        %550 = vmatprep.subr.bf16.mxu0 0
        %551 = vmatpush2.bf16.msra.mxu0 0
        %552 = vmatprep.subr.bf16.mxu0 0
        %553 = vmatpush2.bf16.msra.mxu0 0
        %554 = vmatprep.subr.bf16.mxu0 0
        %555 = vmatpush2.bf16.msra.mxu0 0
        %556 = vmatprep.mubr.bf16.mxu0 0
        %557 = vmatmul.mubr.bf16.gmra.mxu0 %v319
        %v558 = vpop.f32.mrf.mxu0
        %v559 = vadd.f32 %v306, %v558
        %v560 = vpop.f32.mrf.mxu0
        %v561 = vadd.f32 %v310, %v560
        %v562 = vpop.f32.mrf.mxu0
        %v563 = vadd.f32 %v306, %v562
        %v564 = vpop.f32.mrf.mxu0
        %v565 = vadd.f32 %v310, %v564
        %566 = vdwg.mxu0
        %v567 = vmul.f32 %v516, 0.5
        %v568 = vmul.f32 %v518, 0.5
        %v569 = vmul.f32 %v559, 0.5
        %v570 = vmul.f32 %v561, 0.5
        %v571 = vmul.f32 %v520, 0.5
        %v572 = vmul.f32 %v522, 0.5
        %v573 = vmul.f32 %v563, 0.5
        %v574 = vmul.f32 %v565, 0.5
        %v575 = vmul.f32 %v516, 0.70710677
        %v576 = vmul.f32 %v518, 0.70710677
        %v577 = vmul.f32 %v559, 0.70710677
        %v578 = vmul.f32 %v561, 0.70710677
        %v579 = vmul.f32 %v520, 0.70710677
        %v580 = vmul.f32 %v522, 0.70710677
        %v581 = vmul.f32 %v563, 0.70710677
        %v582 = vmul.f32 %v565, 0.70710677
        %v583 = verf.f32.pop %v575
        %v584 = verf.f32.pop %v576
        %v585 = verf.f32.pop %v577
        %v586 = verf.f32.pop %v578
        %v587 = verf.f32.pop %v579
        %v588 = verf.f32.pop %v580
        %v589 = verf.f32.pop %v581
        %v590 = verf.f32.pop %v582
        %v591 = vadd.f32 %v583, 1.0
        %v592 = vadd.f32 %v584, 1.0
        %v593 = vadd.f32 %v585, 1.0
        %v594 = vadd.f32 %v586, 1.0
        %v595 = vadd.f32 %v587, 1.0
        %v596 = vadd.f32 %v588, 1.0
        %v597 = vadd.f32 %v589, 1.0
        %v598 = vadd.f32 %v590, 1.0
        %v599 = vmul.f32 %v567, %v591
        %v600 = vmul.f32 %v568, %v592
        %v601 = vmul.f32 %v569, %v593
        %v602 = vmul.f32 %v570, %v594
        %v603 = vmul.f32 %v571, %v595
        %v604 = vmul.f32 %v572, %v596
        %v605 = vmul.f32 %v573, %v597
        %v606 = vmul.f32 %v574, %v598
        %v607 = vpack.c.bf16 %v603, %v599
        %v608 = vpack.c.bf16 %v604, %v600
        %v609 = vpack.c.bf16 %v605, %v601
        %v610 = vpack.c.bf16 %v606, %v602
        %v611 = vld [vmem:[#allocation4] sm:$0xf]
        %v612 = vld [vmem:[#allocation4 + $0x4] sm:$0xf]
        %v613 = vld [vmem:[#allocation4 + $0x8] sm:$0xf]
        %v614 = vld [vmem:[#allocation4 + $0xc] sm:$0xf]
        %v615 = vld [vmem:[#allocation4 + $0x10] sm:$0xf]
        %v616 = vld [vmem:[#allocation4 + $0x14] sm:$0xf]
        %v617 = vld [vmem:[#allocation4 + $0x18] sm:$0xf]
        %v618 = vld [vmem:[#allocation4 + $0x1c] sm:$0xf]
        %v619 = vld [vmem:[#allocation4 + $0x20] sm:$0xf]
        %v620 = vld [vmem:[#allocation4 + $0x24] sm:$0xf]
        %v621 = vld [vmem:[#allocation4 + $0x28] sm:$0xf]
        %v622 = vld [vmem:[#allocation4 + $0x2c] sm:$0xf]
        %v623 = vld [vmem:[#allocation4 + $0x30] sm:$0xf]
        %v624 = vld [vmem:[#allocation4 + $0x34] sm:$0xf]
        %v625 = vld [vmem:[#allocation4 + $0x38] sm:$0xf]
        %v626 = vld [vmem:[#allocation4 + $0x3c] sm:$0xf]
        %v627 = vld [vmem:[#allocation4 + $0x40] sm:$0xf]
        %v628 = vld [vmem:[#allocation4 + $0x44] sm:$0xf]
        %v629 = vld [vmem:[#allocation4 + $0x48] sm:$0xf]
        %v630 = vld [vmem:[#allocation4 + $0x4c] sm:$0xf]
        %v631 = vld [vmem:[#allocation4 + $0x50] sm:$0xf]
        %v632 = vld [vmem:[#allocation4 + $0x54] sm:$0xf]
        %v633 = vld [vmem:[#allocation4 + $0x58] sm:$0xf]
        %v634 = vld [vmem:[#allocation4 + $0x5c] sm:$0xf]
        %v635 = vld [vmem:[#allocation4 + $0x60] sm:$0xf]
        %v636 = vld [vmem:[#allocation4 + $0x64] sm:$0xf]
        %v637 = vld [vmem:[#allocation4 + $0x68] sm:$0xf]
        %v638 = vld [vmem:[#allocation4 + $0x6c] sm:$0xf]
        %v639 = vld [vmem:[#allocation4 + $0x70] sm:$0xf]
        %v640 = vld [vmem:[#allocation4 + $0x74] sm:$0xf]
        %v641 = vld [vmem:[#allocation4 + $0x78] sm:$0xf]
        %v642 = vld [vmem:[#allocation4 + $0x7c] sm:$0xf]
        %v643 = vld [vmem:[#allocation4 + $0x80] sm:$0xf]
        %v644 = vld [vmem:[#allocation4 + $0x84] sm:$0xf]
        %v645 = vld [vmem:[#allocation4 + $0x88] sm:$0xf]
        %v646 = vld [vmem:[#allocation4 + $0x8c] sm:$0xf]
        %v647 = vld [vmem:[#allocation4 + $0x90] sm:$0xf]
        %v648 = vld [vmem:[#allocation4 + $0x94] sm:$0xf]
        %v649 = vld [vmem:[#allocation4 + $0x98] sm:$0xf]
        %v650 = vld [vmem:[#allocation4 + $0x9c] sm:$0xf]
        %v651 = vld [vmem:[#allocation4 + $0xa0] sm:$0xf]
        %v652 = vld [vmem:[#allocation4 + $0xa4] sm:$0xf]
        %v653 = vld [vmem:[#allocation4 + $0xa8] sm:$0xf]
        %v654 = vld [vmem:[#allocation4 + $0xac] sm:$0xf]
        %v655 = vld [vmem:[#allocation4 + $0xb0] sm:$0xf]
        %v656 = vld [vmem:[#allocation4 + $0xb4] sm:$0xf]
        %v657 = vld [vmem:[#allocation4 + $0xb8] sm:$0xf]
        %v658 = vld [vmem:[#allocation4 + $0xbc] sm:$0xf]
        %v659 = vld [vmem:[#allocation4 + $0xc0] sm:$0xf]
        %v660 = vld [vmem:[#allocation4 + $0xc4] sm:$0xf]
        %v661 = vld [vmem:[#allocation4 + $0xc8] sm:$0xf]
        %v662 = vld [vmem:[#allocation4 + $0xcc] sm:$0xf]
        %v663 = vld [vmem:[#allocation4 + $0xd0] sm:$0xf]
        %v664 = vld [vmem:[#allocation4 + $0xd4] sm:$0xf]
        %v665 = vld [vmem:[#allocation4 + $0xd8] sm:$0xf]
        %v666 = vld [vmem:[#allocation4 + $0xdc] sm:$0xf]
        %v667 = vld [vmem:[#allocation4 + $0xe0] sm:$0xf]
        %v668 = vld [vmem:[#allocation4 + $0xe4] sm:$0xf]
        %v669 = vld [vmem:[#allocation4 + $0xe8] sm:$0xf]
        %v670 = vld [vmem:[#allocation4 + $0xec] sm:$0xf]
        %v671 = vld [vmem:[#allocation4 + $0xf0] sm:$0xf]
        %v672 = vld [vmem:[#allocation4 + $0xf4] sm:$0xf]
        %v673 = vld [vmem:[#allocation4 + $0xf8] sm:$0xf]
        %v674 = vld [vmem:[#allocation4 + $0xfc] sm:$0xf]
        %v675 = vld [vmem:[%s4] sm:$0x1]
        %v677 = vlaneseq
        %v678 = vshrl.u32 %v677, 7
        %v679 = vsub.s32 0, %v678
        %v680 = vrot.slane %v675, %v679
        %v746 = vunpack.c.l.b16 %v611
        %v747 = vunpack.c.l.b16 %v612
        %v748 = vunpack.c.l.b16 %v613
        %v749 = vunpack.c.l.b16 %v614
        %v750 = vunpack.c.l.b16 %v615
        %v751 = vunpack.c.l.b16 %v616
        %v752 = vunpack.c.l.b16 %v617
        %v753 = vunpack.c.l.b16 %v618
        %v754 = vunpack.c.l.b16 %v619
        %v755 = vunpack.c.l.b16 %v620
        %v756 = vunpack.c.l.b16 %v621
        %v757 = vunpack.c.l.b16 %v622
        %v758 = vunpack.c.l.b16 %v623
        %v759 = vunpack.c.l.b16 %v624
        %v760 = vunpack.c.l.b16 %v625
        %v761 = vunpack.c.l.b16 %v626
        %v762 = vunpack.c.l.b16 %v627
        %v763 = vunpack.c.l.b16 %v628
        %v764 = vunpack.c.l.b16 %v629
        %v765 = vunpack.c.l.b16 %v630
        %v766 = vunpack.c.l.b16 %v631
        %v767 = vunpack.c.l.b16 %v632
        %v768 = vunpack.c.l.b16 %v633
        %v769 = vunpack.c.l.b16 %v634
        %v770 = vunpack.c.l.b16 %v635
        %v771 = vunpack.c.l.b16 %v636
        %v772 = vunpack.c.l.b16 %v637
        %v773 = vunpack.c.l.b16 %v638
        %v774 = vunpack.c.l.b16 %v639
        %v775 = vunpack.c.l.b16 %v640
        %v776 = vunpack.c.l.b16 %v641
        %v777 = vunpack.c.l.b16 %v642
        %v778 = vunpack.c.l.b16 %v643
        %v779 = vunpack.c.l.b16 %v644
        %v780 = vunpack.c.l.b16 %v645
        %v781 = vunpack.c.l.b16 %v646
        %v782 = vunpack.c.l.b16 %v647
        %v783 = vunpack.c.l.b16 %v648
        %v784 = vunpack.c.l.b16 %v649
        %v785 = vunpack.c.l.b16 %v650
        %v786 = vunpack.c.l.b16 %v651
        %v787 = vunpack.c.l.b16 %v652
        %v788 = vunpack.c.l.b16 %v653
        %v789 = vunpack.c.l.b16 %v654
        %v790 = vunpack.c.l.b16 %v655
        %v791 = vunpack.c.l.b16 %v656
        %v792 = vunpack.c.l.b16 %v657
        %v793 = vunpack.c.l.b16 %v658
        %v794 = vunpack.c.l.b16 %v659
        %v795 = vunpack.c.l.b16 %v660
        %v796 = vunpack.c.l.b16 %v661
        %v797 = vunpack.c.l.b16 %v662
        %v798 = vunpack.c.l.b16 %v663
        %v799 = vunpack.c.l.b16 %v664
        %v800 = vunpack.c.l.b16 %v665
        %v801 = vunpack.c.l.b16 %v666
        %v802 = vunpack.c.l.b16 %v667
        %v803 = vunpack.c.l.b16 %v668
        %v804 = vunpack.c.l.b16 %v669
        %v805 = vunpack.c.l.b16 %v670
        %v806 = vunpack.c.l.b16 %v671
        %v807 = vunpack.c.l.b16 %v672
        %v808 = vunpack.c.l.b16 %v673
        %v809 = vunpack.c.l.b16 %v674
        %v810 = vpack.c.b16 %v747, %v746
        %v811 = vpack.c.b16 %v749, %v748
        %v812 = vpack.c.b16 %v751, %v750
        %v813 = vpack.c.b16 %v753, %v752
        %v814 = vpack.c.b16 %v755, %v754
        %v815 = vpack.c.b16 %v757, %v756
        %v816 = vpack.c.b16 %v759, %v758
        %v817 = vpack.c.b16 %v761, %v760
        %v818 = vpack.c.b16 %v763, %v762
        %v819 = vpack.c.b16 %v765, %v764
        %v820 = vpack.c.b16 %v767, %v766
        %v821 = vpack.c.b16 %v769, %v768
        %v822 = vpack.c.b16 %v771, %v770
        %v823 = vpack.c.b16 %v773, %v772
        %v824 = vpack.c.b16 %v775, %v774
        %v825 = vpack.c.b16 %v777, %v776
        %v826 = vpack.c.b16 %v779, %v778
        %v827 = vpack.c.b16 %v781, %v780
        %v828 = vpack.c.b16 %v783, %v782
        %v829 = vpack.c.b16 %v785, %v784
        %v830 = vpack.c.b16 %v787, %v786
        %v831 = vpack.c.b16 %v789, %v788
        %v832 = vpack.c.b16 %v791, %v790
        %v833 = vpack.c.b16 %v793, %v792
        %v834 = vpack.c.b16 %v795, %v794
        %v835 = vpack.c.b16 %v797, %v796
        %v836 = vpack.c.b16 %v799, %v798
        %v837 = vpack.c.b16 %v801, %v800
        %v838 = vpack.c.b16 %v803, %v802
        %v839 = vpack.c.b16 %v805, %v804
        %v840 = vpack.c.b16 %v807, %v806
        %v841 = vpack.c.b16 %v809, %v808
        %874 = vmatprep.subr.bf16.mxu0 0
        %875 = vmatpush1.bf16.msra.mxu0 %v817
        %876 = vmatprep.subr.bf16.mxu0 0
        %877 = vmatpush1.bf16.msra.mxu0 %v816
        %878 = vmatprep.subr.bf16.mxu0 0
        %879 = vmatpush1.bf16.msra.mxu0 %v815
        %880 = vmatprep.subr.bf16.mxu0 0
        %881 = vmatpush1.bf16.msra.mxu0 %v814
        %882 = vmatprep.subr.bf16.mxu0 0
        %883 = vmatpush1.bf16.msra.mxu0 %v813
        %884 = vmatprep.subr.bf16.mxu0 0
        %885 = vmatpush1.bf16.msra.mxu0 %v812
        %886 = vmatprep.subr.bf16.mxu0 0
        %887 = vmatpush1.bf16.msra.mxu0 %v811
        %888 = vmatprep.subr.bf16.mxu0 0
        %889 = vmatpush1.bf16.msra.mxu0 %v810
        %890 = vmatprep.subr.bf16.mxu0 0
        %891 = vmatpush2.bf16.msra.mxu0 %v825
        %892 = vmatprep.subr.bf16.mxu0 0
        %893 = vmatpush2.bf16.msra.mxu0 %v824
        %894 = vmatprep.subr.bf16.mxu0 0
        %895 = vmatpush2.bf16.msra.mxu0 %v823
        %896 = vmatprep.subr.bf16.mxu0 0
        %897 = vmatpush2.bf16.msra.mxu0 %v822
        %898 = vmatprep.subr.bf16.mxu0 0
        %899 = vmatpush2.bf16.msra.mxu0 %v821
        %900 = vmatprep.subr.bf16.mxu0 0
        %901 = vmatpush2.bf16.msra.mxu0 %v820
        %902 = vmatprep.subr.bf16.mxu0 0
        %903 = vmatpush2.bf16.msra.mxu0 %v819
        %904 = vmatprep.subr.bf16.mxu0 0
        %905 = vmatpush2.bf16.msra.mxu0 %v818
        %906 = vmatprep.mubr.bf16.mxu0 %v608
        %907 = vmatmul.mubr.bf16.gmra.mxu0 %v607
        %v908 = vpop.f32.mrf.mxu0
        %v909 = vadd.f32 %v680, %v908
        %v910 = vpop.f32.mrf.mxu0
        %v911 = vpop.f32.mrf.mxu0
        %v912 = vadd.f32 %v680, %v911
        %v913 = vpop.f32.mrf.mxu0
        %914 = vdwg.mxu0
        %915 = vmatprep.subr.bf16.mxu0 0
        %916 = vmatpush1.bf16.msra.mxu0 %v833
        %917 = vmatprep.subr.bf16.mxu0 0
        %918 = vmatpush1.bf16.msra.mxu0 %v832
        %919 = vmatprep.subr.bf16.mxu0 0
        %920 = vmatpush1.bf16.msra.mxu0 %v831
        %921 = vmatprep.subr.bf16.mxu0 0
        %922 = vmatpush1.bf16.msra.mxu0 %v830
        %923 = vmatprep.subr.bf16.mxu0 0
        %924 = vmatpush1.bf16.msra.mxu0 %v829
        %925 = vmatprep.subr.bf16.mxu0 0
        %926 = vmatpush1.bf16.msra.mxu0 %v828
        %927 = vmatprep.subr.bf16.mxu0 0
        %928 = vmatpush1.bf16.msra.mxu0 %v827
        %929 = vmatprep.subr.bf16.mxu0 0
        %930 = vmatpush1.bf16.msra.mxu0 %v826
        %931 = vmatprep.subr.bf16.mxu0 0
        %932 = vmatpush2.bf16.msra.mxu0 %v841
        %933 = vmatprep.subr.bf16.mxu0 0
        %934 = vmatpush2.bf16.msra.mxu0 %v840
        %935 = vmatprep.subr.bf16.mxu0 0
        %936 = vmatpush2.bf16.msra.mxu0 %v839
        %937 = vmatprep.subr.bf16.mxu0 0
        %938 = vmatpush2.bf16.msra.mxu0 %v838
        %939 = vmatprep.subr.bf16.mxu0 0
        %940 = vmatpush2.bf16.msra.mxu0 %v837
        %941 = vmatprep.subr.bf16.mxu0 0
        %942 = vmatpush2.bf16.msra.mxu0 %v836
        %943 = vmatprep.subr.bf16.mxu0 0
        %944 = vmatpush2.bf16.msra.mxu0 %v835
        %945 = vmatprep.subr.bf16.mxu0 0
        %946 = vmatpush2.bf16.msra.mxu0 %v834
        %947 = vmatprep.mubr.bf16.mxu0 %v610
        %948 = vmatmul.mubr.bf16.gmra.mxu0 %v609
        %v949 = vpop.f32.mrf.mxu0
        %v950 = vadd.f32 %v909, %v949
        %v951 = vpop.f32.mrf.mxu0
        %v952 = vpop.f32.mrf.mxu0
        %v953 = vadd.f32 %v912, %v952
        %v954 = vpop.f32.mrf.mxu0
        %955 = vdwg.mxu0
        %956 = vst [vmem:[%s256] sm:$0xff] %v950
        %957 = vst [vmem:[%s256 + $0x8] sm:$0xff] %v953
        %s958 = smul.u32 2, %s18
        %p959 = scmp.lt.s32.totalorder %s958, 3
        %s960 = scalar_select %p959, %s958, 3
        %s961 = smul.addr %s960, 8
        %s962 = scalar_lea.vmem %s5, %s961
        // Predicated region
        $region49: #{mlp_block.1} parent=39 // pred_check
          %p963 = pneg %p146
        $region50: #{mlp_block.1} parent=39 // pred_check_branch
          %965 = sbr.rel (%p963) target = $region52
        $region51: #{mlp_block.1} parent=39 // pred_region
          %s966 = smul.u32 2, %s18
        $region52: #{mlp_block.1} parent=39 // pred_fallthru
          _
      $region40: #{mlp_block.1} parent=5 // pred_fallthru
        _
      %p967 = scmp.le.s32.totalorder 2, %s13
      // Predicated region
      $region53: #{mlp_block.1} parent=5 // pred_check
        %p968 = pneg %p967
      $region54: #{mlp_block.1} parent=5 // pred_check_branch
        %970 = sbr.rel (%p968) target = $region56
      $region55: #{mlp_block.1} parent=5 // pred_region
        %s971 = ssub.s32 %s13, 2
        // Predicated region
        $region57: #{mlp_block.1} parent=55 // pred_check
          %p972 = pneg %p152
        $region58: #{mlp_block.1} parent=55 // pred_check_branch
          %974 = sbr.rel (%p972) target = $region60
        $region59: #{mlp_block.1} parent=55 // pred_region
          %s975 = smul.u32 2, %s19
          %p976 = scmp.lt.s32.totalorder %s975, 3
          %s977 = scalar_select %p976, %s975, 3
          %s978 = smul.addr %s977, 8
          %s979 = scalar_lea.vmem %s5, %s978
        $region60: #{mlp_block.1} parent=55 // pred_fallthru
          _
      $region56: #{mlp_block.1} parent=5 // pred_fallthru
        _
    $region6: #{mlp_block.1} parent=1 // loop_footer
      %s17 = sadd.s32 1, %s13
    $region7: #{mlp_block.1} parent=1 // loop_footer_branch
      %12 = sbr.rel target = $region3
    $region8: #{mlp_block.1} parent=1 // loop_exit
      _
    %980 = vsyncpa [#allocation3], 1
    %s981 = scalar_lea.sflag [#allocation3], 1
    %982 = vsyncpa %s981, 1
    %983 = vsyncpa [#allocation5], 1

</llo_original>
